<compile_context>
chip_gen: v6e
topology: v6e:2x2x1
jax: 0.10.0
libtpu: 0.0.40
codegen_flags: <defaults>
</compile_context>

<pallas_src>
import jax
import jax.numpy as jnp
import numpy as np
from jax.experimental import pallas as pl
from jax.experimental.pallas import tpu as pltpu

_INV_1P1 = 1.0 / 1.1


def _swish_kernel(scale_ref, x_ref, o_ref):
    """One (TR, TC) tile: out = x * sigmoid(x * softplus(beta)) / 1.1."""
    sp = scale_ref[0]                             # softplus(beta), SMEM f32 scalar
    x = x_ref[...].astype(jnp.float32)            # VPU math in f32
    y = (x * jax.nn.sigmoid(x * sp)) * jnp.float32(_INV_1P1)
    o_ref[...] = y.astype(o_ref.dtype)


def _pick_tile(n, unit, cap):
    """Largest tile <= cap that is a multiple of `unit`, or the full (small) extent."""
    if n % unit == 0:
        return min(n, cap)
    if n < unit:
        return n                                  # full-extent block is always legal
    return min((n // unit) * unit, cap)           # multiple of unit; ragged edge masked


def swish(x, beta):
    """Pallas Swish. x: any-rank float array; beta: scalar / 1-element parameter."""
    orig_shape = x.shape
    n = int(np.prod(orig_shape)) if x.ndim else 1

    # softplus(beta) is a pure scalar parameter transform: do it once on the host side.
    sp = jax.nn.softplus(jnp.asarray(beta, jnp.float32)).reshape((1,))[:1]

    # Lane-dense 2-D view.  A contiguous reshape is free, so prefer a flat view whose
    # last dim is a multiple of 128 (unmasked full-width vst); otherwise fall back to
    # (prod(leading), last_dim) and let Pallas mask the ragged edge blocks.
    x2 = None
    for w in (1024, 512, 256, 128):
        if n % w == 0:
            x2 = x.reshape(n // w, w)
            break
    if x2 is None:
        c = orig_shape[-1] if x.ndim >= 1 else 1
        x2 = x.reshape(n // c, c)

    R, C = x2.shape
    TR = _pick_tile(R, 8, 256)      # sublane-dense rows
    TC = _pick_tile(C, 128, 1024)   # lane-dense columns
    grid = (pl.cdiv(R, TR), pl.cdiv(C, TC))

    out = pl.pallas_call(
        _swish_kernel,
        out_shape=jax.ShapeDtypeStruct((R, C), x.dtype),
        grid_spec=pltpu.PrefetchScalarGridSpec(
            num_scalar_prefetch=0,
            grid=grid,
            in_specs=[
                pl.BlockSpec(memory_space=pltpu.MemorySpace.SMEM),   # softplus(beta)
                pl.BlockSpec((TR, TC), lambda i, j: (i, j)),         # x tile
            ],
            out_specs=pl.BlockSpec((TR, TC), lambda i, j: (i, j)),
        ),
        compiler_params=pltpu.CompilerParams(
            dimension_semantics=("parallel", "parallel"),
        ),
    )(sp, x2)

    return out.reshape(orig_shape)


def swish_reference(x, beta):
    """Pure-JAX mirror of the PyTorch Swish module (f32 math, cast back to x.dtype)."""
    sp = jax.nn.softplus(jnp.asarray(beta, jnp.float32)).reshape(())
    xf = x.astype(jnp.float32)
    return ((xf * jax.nn.sigmoid(xf * sp)) / 1.1).astype(x.dtype)


if __name__ == "__main__":
    key = jax.random.PRNGKey(0)
    k1, k2, k3, k4 = jax.random.split(key, 4)
    beta = jnp.array([0.5], jnp.float32)          # nn.Parameter(torch.tensor([0.5]))

    # 1) lane-aligned f32 activations (flat-view fast path, multi-block pipelined grid)
    x_a = jax.random.normal(k1, (4, 64, 256), jnp.float32)
    out_a = jax.block_until_ready(swish(x_a, beta))
    np.testing.assert_allclose(np.asarray(out_a),
                               np.asarray(swish_reference(x_a, beta)),
                               rtol=1e-5, atol=1e-5)
    assert out_a.shape == x_a.shape and out_a.dtype == x_a.dtype

    # 2) small shape that still flattens to a 128-multiple (single dense block)
    x_b = jax.random.normal(k2, (2, 8, 32), jnp.float32)
    out_b = jax.block_until_ready(swish(x_b, beta))
    np.testing.assert_allclose(np.asarray(out_b),
                               np.asarray(swish_reference(x_b, beta)),
                               rtol=1e-5, atol=1e-5)
    assert out_b.shape == x_b.shape

    # 3) ragged shape (exercises the masked partial-block fallback, no explicit pad)
    x_c = jax.random.normal(k3, (3, 5, 7), jnp.float32)
    out_c = jax.block_until_ready(swish(x_c, beta))
    np.testing.assert_allclose(np.asarray(out_c),
                               np.asarray(swish_reference(x_c, beta)),
                               rtol=1e-5, atol=1e-5)
    assert out_c.shape == x_c.shape

    # 4) bf16 activations pass through in native dtype (half the HBM traffic)
    x_d = jax.random.normal(k4, (2, 4, 16, 16), jnp.float32).astype(jnp.bfloat16)
    out_d = jax.block_until_ready(swish(x_d, beta))
    np.testing.assert_allclose(np.asarray(out_d, dtype=np.float32),
                               np.asarray(swish_reference(x_d, beta), dtype=np.float32),
                               rtol=2e-2, atol=2e-2)
    assert out_d.dtype == jnp.bfloat16 and out_d.shape == x_d.shape

    print("KERNEL_OK")
</pallas_src>

<mosaic_0001>
module attributes {stable_mosaic.version = 11 : i64} {
  func.func @_swish_kernel(%arg0: i32, %arg1: i32, %arg2: memref<1xf32, #tpu.memory_space<smem>>, %arg3: memref<64x1024xf32, #tpu.memory_space<vmem>>, %arg4: memref<64x1024xf32, #tpu.memory_space<vmem>>) attributes {dimension_semantics = [#tpu.dimension_semantics<parallel>, #tpu.dimension_semantics<parallel>], iteration_bounds = array<i64: 1, 1>, scalar_prefetch = 0 : i64, scratch_operands = 0 : i64, tpu.core_type = #tpu.core_type<tc>, window_params = [{transform_indices = @transform_0, window_bounds = array<i64: 1>}, {transform_indices = @transform_1, window_bounds = array<i64: 64, 1024>}, {transform_indices = @transform_2, window_bounds = array<i64: 64, 1024>}]} {
    %c0 = arith.constant 0 : index
    %0 = memref.load %arg2[%c0] : memref<1xf32, #tpu.memory_space<smem>>
    %c0_0 = arith.constant 0 : index
    %c0_1 = arith.constant 0 : index
    %1 = vector.load %arg3[%c0_0, %c0_1] : memref<64x1024xf32, #tpu.memory_space<vmem>>, vector<64x1024xf32>
    %2 = vector.broadcast %0 : f32 to vector<64x1024xf32>
    %3 = arith.mulf %1, %2 : vector<64x1024xf32>
    %4 = arith.negf %3 : vector<64x1024xf32>
    %5 = math.exp %4 : vector<64x1024xf32>
    %cst = arith.constant 1.000000e+00 : f32
    %6 = vector.broadcast %cst : f32 to vector<64x1024xf32>
    %7 = arith.addf %6, %5 : vector<64x1024xf32>
    %8 = arith.divf %6, %7 : vector<64x1024xf32>
    %9 = arith.mulf %1, %8 : vector<64x1024xf32>
    %cst_2 = arith.constant 0.909090936 : f32
    %10 = vector.broadcast %cst_2 : f32 to vector<64x1024xf32>
    %11 = arith.mulf %9, %10 : vector<64x1024xf32>
    %c0_3 = arith.constant 0 : index
    %c0_4 = arith.constant 0 : index
    %12 = vector.load %arg4[%c0_3, %c0_4] : memref<64x1024xf32, #tpu.memory_space<vmem>>, vector<64x1024xf32>
    tpu.vector_store %arg4[%c0_3, %c0_4], %11 {strides = array<i32>} : memref<64x1024xf32, #tpu.memory_space<vmem>>, vector<64x1024xf32>,
    return
  }
  func.func @transform_0(%arg0: i32, %arg1: i32) -> i32 {
    %c0_i32 = arith.constant 0 : i32
    %c0_i32_0 = arith.constant 0 : i32
    return %c0_i32 : i32
  }
  func.func @transform_1(%arg0: i32, %arg1: i32) -> (i32, i32) {
    %c0_i32 = arith.constant 0 : i32
    return %arg0, %arg1 : i32, i32
  }
  func.func @transform_2(%arg0: i32, %arg1: i32) -> (i32, i32) {
    %c0_i32 = arith.constant 0 : i32
    return %arg0, %arg1 : i32, i32
  }
}

</mosaic_0001>

<llo_original>
// kernel: tpu_custom_call.1
$region0: #{tpu_custom_call.1}
  #allocation0 [shape = 'u32[]', space=smem, size = 0x4, offset = 0x4, fixed_abs, tag = 'smem constant byte address 0x4 - core index']
  #allocation1 [shape = 'u32[144,128]{1,0:T(1,128)}', space=vmem, size = 0x12000, scoped, tag = 'internal scratch']
  #allocation2 [shape = 'f32[1]{0:T(128)S(6)}', space=smem, size = 0x200, scoped, tag = 'scoped memory for tpu_custom_call.1']
  %s0 = inlined_call_operand.<no memory space> [shape: f32[1], index: 0, kind: input, shape index: {}]
  %s1 = inlined_call_operand.hbm [shape: f32[64,1024], index: 1, kind: input, shape index: {}]
  %s2 = inlined_call_operand.hbm [shape: f32[64,1024], index: 2, kind: output, shape index: {}]
  %s3 = sld [smem:[#allocation0]]
  $region22: #{tpu_custom_call.1} parent=0
    _
  %s5 = ssub.s32 1, %s3
  %s6 = scalar_select 0, %s5, %s3
  %7 = sst [smem:[#allocation2]] %s0
  $region1: #{tpu_custom_call.1} parent=0
    #allocation3 [shape = 'u8[262144]{0}', space=vmem, size = 0x40000, scoped, tag = 'input window, operand 1, single buffered']
    #allocation4 [shape = 's32[1]{0}', space=sflag, size = 0x4, scoped, tag = 'scoped memory for tpu_custom_call.1']
    #allocation5 [shape = 's32[1]{0}', space=sflag, size = 0x4, scoped, tag = 'scoped memory for tpu_custom_call.1']
    #allocation6 [shape = 'u8[262144]{0}', space=vmem, size = 0x40000, scoped, tag = 'output window, operand 0, single buffered']
    %8 = vsyncpa [#allocation4], 0
    %9 = vsyncpa [#allocation5], 0
    // Predicated region
    $region2: #{tpu_custom_call.1} parent=1 // pred_check
      _
    $region3: #{tpu_custom_call.1} parent=1 // pred_check_branch
      %11 = sbr.rel (0) target = $region5
    $region4: #{tpu_custom_call.1} parent=1 // pred_region
      _
    $region5: #{tpu_custom_call.1} parent=1 // pred_fallthru
      _
    // Predicated region
    $region6: #{tpu_custom_call.1} parent=1 // pred_check
      _
    $region7: #{tpu_custom_call.1} parent=1 // pred_check_branch
      %13 = sbr.rel (0) target = $region9
    $region8: #{tpu_custom_call.1} parent=1 // pred_region
      %s15 = ssub.s32 8192, 8192
      %16 = vsyncadd [#allocation4], %s15
      %s17 = sshll.u32 [#allocation3], 4
      %s18 = int_to_ptr.vmem [resolvable:$true] %s17
      %23 = dma.hbm_to_vmem [thread:$0]  %s1, 8192, %s18, [#allocation4], 1024, 1024, 64
    $region9: #{tpu_custom_call.1} parent=1 // pred_fallthru
      _
    // Predicated region
    $region10: #{tpu_custom_call.1} parent=1 // pred_check
      _
    $region11: #{tpu_custom_call.1} parent=1 // pred_check_branch
      %25 = sbr.rel (0) target = $region13
    $region12: #{tpu_custom_call.1} parent=1 // pred_region
      %26 = dma.done [#allocation4], 8192
    $region13: #{tpu_custom_call.1} parent=1 // pred_fallthru
      _
    %s27 = sld [smem:[#allocation2]]
    %v28 = vld [vmem:[#allocation3] sm:$0xff]
    %v29 = vld [vmem:[#allocation3 + $0x8] sm:$0xff]
    %v30 = vld [vmem:[#allocation3 + $0x10] sm:$0xff]
    %v31 = vld [vmem:[#allocation3 + $0x18] sm:$0xff]
    %v32 = vld [vmem:[#allocation3 + $0x20] sm:$0xff]
    %v33 = vld [vmem:[#allocation3 + $0x28] sm:$0xff]
    %v34 = vld [vmem:[#allocation3 + $0x30] sm:$0xff]
    %v35 = vld [vmem:[#allocation3 + $0x38] sm:$0xff]
    %v36 = vld [vmem:[#allocation3 + $0x40] sm:$0xff]
    %v37 = vld [vmem:[#allocation3 + $0x48] sm:$0xff]
    %v38 = vld [vmem:[#allocation3 + $0x50] sm:$0xff]
    %v39 = vld [vmem:[#allocation3 + $0x58] sm:$0xff]
    %v40 = vld [vmem:[#allocation3 + $0x60] sm:$0xff]
    %v41 = vld [vmem:[#allocation3 + $0x68] sm:$0xff]
    %v42 = vld [vmem:[#allocation3 + $0x70] sm:$0xff]
    %v43 = vld [vmem:[#allocation3 + $0x78] sm:$0xff]
    %v44 = vld [vmem:[#allocation3 + $0x80] sm:$0xff]
    %v45 = vld [vmem:[#allocation3 + $0x88] sm:$0xff]
    %v46 = vld [vmem:[#allocation3 + $0x90] sm:$0xff]
    %v47 = vld [vmem:[#allocation3 + $0x98] sm:$0xff]
    %v48 = vld [vmem:[#allocation3 + $0xa0] sm:$0xff]
    %v49 = vld [vmem:[#allocation3 + $0xa8] sm:$0xff]
    %v50 = vld [vmem:[#allocation3 + $0xb0] sm:$0xff]
    %v51 = vld [vmem:[#allocation3 + $0xb8] sm:$0xff]
    %v52 = vld [vmem:[#allocation3 + $0xc0] sm:$0xff]
    %v53 = vld [vmem:[#allocation3 + $0xc8] sm:$0xff]
    %v54 = vld [vmem:[#allocation3 + $0xd0] sm:$0xff]
    %v55 = vld [vmem:[#allocation3 + $0xd8] sm:$0xff]
    %v56 = vld [vmem:[#allocation3 + $0xe0] sm:$0xff]
    %v57 = vld [vmem:[#allocation3 + $0xe8] sm:$0xff]
    %v58 = vld [vmem:[#allocation3 + $0xf0] sm:$0xff]
    %v59 = vld [vmem:[#allocation3 + $0xf8] sm:$0xff]
    %v60 = vld [vmem:[#allocation3 + $0x100] sm:$0xff]
    %v61 = vld [vmem:[#allocation3 + $0x108] sm:$0xff]
    %v62 = vld [vmem:[#allocation3 + $0x110] sm:$0xff]
    %v63 = vld [vmem:[#allocation3 + $0x118] sm:$0xff]
    %v64 = vld [vmem:[#allocation3 + $0x120] sm:$0xff]
    %v65 = vld [vmem:[#allocation3 + $0x128] sm:$0xff]
    %v66 = vld [vmem:[#allocation3 + $0x130] sm:$0xff]
    %v67 = vld [vmem:[#allocation3 + $0x138] sm:$0xff]
    %v68 = vld [vmem:[#allocation3 + $0x140] sm:$0xff]
    %v69 = vld [vmem:[#allocation3 + $0x148] sm:$0xff]
    %v70 = vld [vmem:[#allocation3 + $0x150] sm:$0xff]
    %v71 = vld [vmem:[#allocation3 + $0x158] sm:$0xff]
    %v72 = vld [vmem:[#allocation3 + $0x160] sm:$0xff]
    %v73 = vld [vmem:[#allocation3 + $0x168] sm:$0xff]
    %v74 = vld [vmem:[#allocation3 + $0x170] sm:$0xff]
    %v75 = vld [vmem:[#allocation3 + $0x178] sm:$0xff]
    %v76 = vld [vmem:[#allocation3 + $0x180] sm:$0xff]
    %v77 = vld [vmem:[#allocation3 + $0x188] sm:$0xff]
    %v78 = vld [vmem:[#allocation3 + $0x190] sm:$0xff]
    %v79 = vld [vmem:[#allocation3 + $0x198] sm:$0xff]
    %v80 = vld [vmem:[#allocation3 + $0x1a0] sm:$0xff]
    %v81 = vld [vmem:[#allocation3 + $0x1a8] sm:$0xff]
    %v82 = vld [vmem:[#allocation3 + $0x1b0] sm:$0xff]
    %v83 = vld [vmem:[#allocation3 + $0x1b8] sm:$0xff]
    %v84 = vld [vmem:[#allocation3 + $0x1c0] sm:$0xff]
    %v85 = vld [vmem:[#allocation3 + $0x1c8] sm:$0xff]
    %v86 = vld [vmem:[#allocation3 + $0x1d0] sm:$0xff]
    %v87 = vld [vmem:[#allocation3 + $0x1d8] sm:$0xff]
    %v88 = vld [vmem:[#allocation3 + $0x1e0] sm:$0xff]
    %v89 = vld [vmem:[#allocation3 + $0x1e8] sm:$0xff]
    %v90 = vld [vmem:[#allocation3 + $0x1f0] sm:$0xff]
    %v91 = vld [vmem:[#allocation3 + $0x1f8] sm:$0xff]
    %v92 = vstv %s27
    %v93 = vmul.f32 %v28, %v92
    %v94 = vmul.f32 %v29, %v92
    %v95 = vmul.f32 %v30, %v92
    %v96 = vmul.f32 %v31, %v92
    %v97 = vmul.f32 %v32, %v92
    %v98 = vmul.f32 %v33, %v92
    %v99 = vmul.f32 %v34, %v92
    %v100 = vmul.f32 %v35, %v92
    %v101 = vmul.f32 %v36, %v92
    %v102 = vmul.f32 %v37, %v92
    %v103 = vmul.f32 %v38, %v92
    %v104 = vmul.f32 %v39, %v92
    %v105 = vmul.f32 %v40, %v92
    %v106 = vmul.f32 %v41, %v92
    %v107 = vmul.f32 %v42, %v92
    %v108 = vmul.f32 %v43, %v92
    %v109 = vmul.f32 %v44, %v92
    %v110 = vmul.f32 %v45, %v92
    %v111 = vmul.f32 %v46, %v92
    %v112 = vmul.f32 %v47, %v92
    %v113 = vmul.f32 %v48, %v92
    %v114 = vmul.f32 %v49, %v92
    %v115 = vmul.f32 %v50, %v92
    %v116 = vmul.f32 %v51, %v92
    %v117 = vmul.f32 %v52, %v92
    %v118 = vmul.f32 %v53, %v92
    %v119 = vmul.f32 %v54, %v92
    %v120 = vmul.f32 %v55, %v92
    %v121 = vmul.f32 %v56, %v92
    %v122 = vmul.f32 %v57, %v92
    %v123 = vmul.f32 %v58, %v92
    %v124 = vmul.f32 %v59, %v92
    %v125 = vmul.f32 %v60, %v92
    %v126 = vmul.f32 %v61, %v92
    %v127 = vmul.f32 %v62, %v92
    %v128 = vmul.f32 %v63, %v92
    %v129 = vmul.f32 %v64, %v92
    %v130 = vmul.f32 %v65, %v92
    %v131 = vmul.f32 %v66, %v92
    %v132 = vmul.f32 %v67, %v92
    %v133 = vmul.f32 %v68, %v92
    %v134 = vmul.f32 %v69, %v92
    %v135 = vmul.f32 %v70, %v92
    %v136 = vmul.f32 %v71, %v92
    %v137 = vmul.f32 %v72, %v92
    %v138 = vmul.f32 %v73, %v92
    %v139 = vmul.f32 %v74, %v92
    %v140 = vmul.f32 %v75, %v92
    %v141 = vmul.f32 %v76, %v92
    %v142 = vmul.f32 %v77, %v92
    %v143 = vmul.f32 %v78, %v92
    %v144 = vmul.f32 %v79, %v92
    %v145 = vmul.f32 %v80, %v92
    %v146 = vmul.f32 %v81, %v92
    %v147 = vmul.f32 %v82, %v92
    %v148 = vmul.f32 %v83, %v92
    %v149 = vmul.f32 %v84, %v92
    %v150 = vmul.f32 %v85, %v92
    %v151 = vmul.f32 %v86, %v92
    %v152 = vmul.f32 %v87, %v92
    %v153 = vmul.f32 %v88, %v92
    %v154 = vmul.f32 %v89, %v92
    %v155 = vmul.f32 %v90, %v92
    %v156 = vmul.f32 %v91, %v92
    %v157 = vxor.u32 %v93, 2147483648
    %v158 = vxor.u32 %v94, 2147483648
    %v159 = vxor.u32 %v95, 2147483648
    %v160 = vxor.u32 %v96, 2147483648
    %v161 = vxor.u32 %v97, 2147483648
    %v162 = vxor.u32 %v98, 2147483648
    %v163 = vxor.u32 %v99, 2147483648
    %v164 = vxor.u32 %v100, 2147483648
    %v165 = vxor.u32 %v101, 2147483648
    %v166 = vxor.u32 %v102, 2147483648
    %v167 = vxor.u32 %v103, 2147483648
    %v168 = vxor.u32 %v104, 2147483648
    %v169 = vxor.u32 %v105, 2147483648
    %v170 = vxor.u32 %v106, 2147483648
    %v171 = vxor.u32 %v107, 2147483648
    %v172 = vxor.u32 %v108, 2147483648
    %v173 = vxor.u32 %v109, 2147483648
    %v174 = vxor.u32 %v110, 2147483648
    %v175 = vxor.u32 %v111, 2147483648
    %v176 = vxor.u32 %v112, 2147483648
    %v177 = vxor.u32 %v113, 2147483648
    %v178 = vxor.u32 %v114, 2147483648
    %v179 = vxor.u32 %v115, 2147483648
    %v180 = vxor.u32 %v116, 2147483648
    %v181 = vxor.u32 %v117, 2147483648
    %v182 = vxor.u32 %v118, 2147483648
    %v183 = vxor.u32 %v119, 2147483648
    %v184 = vxor.u32 %v120, 2147483648
    %v185 = vxor.u32 %v121, 2147483648
    %v186 = vxor.u32 %v122, 2147483648
    %v187 = vxor.u32 %v123, 2147483648
    %v188 = vxor.u32 %v124, 2147483648
    %v189 = vxor.u32 %v125, 2147483648
    %v190 = vxor.u32 %v126, 2147483648
    %v191 = vxor.u32 %v127, 2147483648
    %v192 = vxor.u32 %v128, 2147483648
    %v193 = vxor.u32 %v129, 2147483648
    %v194 = vxor.u32 %v130, 2147483648
    %v195 = vxor.u32 %v131, 2147483648
    %v196 = vxor.u32 %v132, 2147483648
    %v197 = vxor.u32 %v133, 2147483648
    %v198 = vxor.u32 %v134, 2147483648
    %v199 = vxor.u32 %v135, 2147483648
    %v200 = vxor.u32 %v136, 2147483648
    %v201 = vxor.u32 %v137, 2147483648
    %v202 = vxor.u32 %v138, 2147483648
    %v203 = vxor.u32 %v139, 2147483648
    %v204 = vxor.u32 %v140, 2147483648
    %v205 = vxor.u32 %v141, 2147483648
    %v206 = vxor.u32 %v142, 2147483648
    %v207 = vxor.u32 %v143, 2147483648
    %v208 = vxor.u32 %v144, 2147483648
    %v209 = vxor.u32 %v145, 2147483648
    %v210 = vxor.u32 %v146, 2147483648
    %v211 = vxor.u32 %v147, 2147483648
    %v212 = vxor.u32 %v148, 2147483648
    %v213 = vxor.u32 %v149, 2147483648
    %v214 = vxor.u32 %v150, 2147483648
    %v215 = vxor.u32 %v151, 2147483648
    %v216 = vxor.u32 %v152, 2147483648
    %v217 = vxor.u32 %v153, 2147483648
    %v218 = vxor.u32 %v154, 2147483648
    %v219 = vxor.u32 %v155, 2147483648
    %v220 = vxor.u32 %v156, 2147483648
    %v221 = vmul.f32 %v157, 1.442695
    %v222 = vpow.pop %v221
    %v223 = vmul.f32 %v158, 1.442695
    %v224 = vpow.pop %v223
    %v225 = vmul.f32 %v159, 1.442695
    %v226 = vpow.pop %v225
    %v227 = vmul.f32 %v160, 1.442695
    %v228 = vpow.pop %v227
    %v229 = vmul.f32 %v161, 1.442695
    %v230 = vpow.pop %v229
    %v231 = vmul.f32 %v162, 1.442695
    %v232 = vpow.pop %v231
    %v233 = vmul.f32 %v163, 1.442695
    %v234 = vpow.pop %v233
    %v235 = vmul.f32 %v164, 1.442695
    %v236 = vpow.pop %v235
    %v237 = vmul.f32 %v165, 1.442695
    %v238 = vpow.pop %v237
    %v239 = vmul.f32 %v166, 1.442695
    %v240 = vpow.pop %v239
    %v241 = vmul.f32 %v167, 1.442695
    %v242 = vpow.pop %v241
    %v243 = vmul.f32 %v168, 1.442695
    %v244 = vpow.pop %v243
    %v245 = vmul.f32 %v169, 1.442695
    %v246 = vpow.pop %v245
    %v247 = vmul.f32 %v170, 1.442695
    %v248 = vpow.pop %v247
    %v249 = vmul.f32 %v171, 1.442695
    %v250 = vpow.pop %v249
    %v251 = vmul.f32 %v172, 1.442695
    %v252 = vpow.pop %v251
    %v253 = vmul.f32 %v173, 1.442695
    %v254 = vpow.pop %v253
    %v255 = vmul.f32 %v174, 1.442695
    %v256 = vpow.pop %v255
    %v257 = vmul.f32 %v175, 1.442695
    %v258 = vpow.pop %v257
    %v259 = vmul.f32 %v176, 1.442695
    %v260 = vpow.pop %v259
    %v261 = vmul.f32 %v177, 1.442695
    %v262 = vpow.pop %v261
    %v263 = vmul.f32 %v178, 1.442695
    %v264 = vpow.pop %v263
    %v265 = vmul.f32 %v179, 1.442695
    %v266 = vpow.pop %v265
    %v267 = vmul.f32 %v180, 1.442695
    %v268 = vpow.pop %v267
    %v269 = vmul.f32 %v181, 1.442695
    %v270 = vpow.pop %v269
    %v271 = vmul.f32 %v182, 1.442695
    %v272 = vpow.pop %v271
    %v273 = vmul.f32 %v183, 1.442695
    %v274 = vpow.pop %v273
    %v275 = vmul.f32 %v184, 1.442695
    %v276 = vpow.pop %v275
    %v277 = vmul.f32 %v185, 1.442695
    %v278 = vpow.pop %v277
    %v279 = vmul.f32 %v186, 1.442695
    %v280 = vpow.pop %v279
    %v281 = vmul.f32 %v187, 1.442695
    %v282 = vpow.pop %v281
    %v283 = vmul.f32 %v188, 1.442695
    %v284 = vpow.pop %v283
    %v285 = vmul.f32 %v189, 1.442695
    %v286 = vpow.pop %v285
    %v287 = vmul.f32 %v190, 1.442695
    %v288 = vpow.pop %v287
    %v289 = vmul.f32 %v191, 1.442695
    %v290 = vpow.pop %v289
    %v291 = vmul.f32 %v192, 1.442695
    %v292 = vpow.pop %v291
    %v293 = vmul.f32 %v193, 1.442695
    %v294 = vpow.pop %v293
    %v295 = vmul.f32 %v194, 1.442695
    %v296 = vpow.pop %v295
    %v297 = vmul.f32 %v195, 1.442695
    %v298 = vpow.pop %v297
    %v299 = vmul.f32 %v196, 1.442695
    %v300 = vpow.pop %v299
    %v301 = vmul.f32 %v197, 1.442695
    %v302 = vpow.pop %v301
    %v303 = vmul.f32 %v198, 1.442695
    %v304 = vpow.pop %v303
    %v305 = vmul.f32 %v199, 1.442695
    %v306 = vpow.pop %v305
    %v307 = vmul.f32 %v200, 1.442695
    %v308 = vpow.pop %v307
    %v309 = vmul.f32 %v201, 1.442695
    %v310 = vpow.pop %v309
    %v311 = vmul.f32 %v202, 1.442695
    %v312 = vpow.pop %v311
    %v313 = vmul.f32 %v203, 1.442695
    %v314 = vpow.pop %v313
    %v315 = vmul.f32 %v204, 1.442695
    %v316 = vpow.pop %v315
    %v317 = vmul.f32 %v205, 1.442695
    %v318 = vpow.pop %v317
    %v319 = vmul.f32 %v206, 1.442695
    %v320 = vpow.pop %v319
    %v321 = vmul.f32 %v207, 1.442695
    %v322 = vpow.pop %v321
    %v323 = vmul.f32 %v208, 1.442695
    %v324 = vpow.pop %v323
    %v325 = vmul.f32 %v209, 1.442695
    %v326 = vpow.pop %v325
    %v327 = vmul.f32 %v210, 1.442695
    %v328 = vpow.pop %v327
    %v329 = vmul.f32 %v211, 1.442695
    %v330 = vpow.pop %v329
    %v331 = vmul.f32 %v212, 1.442695
    %v332 = vpow.pop %v331
    %v333 = vmul.f32 %v213, 1.442695
    %v334 = vpow.pop %v333
    %v335 = vmul.f32 %v214, 1.442695
    %v336 = vpow.pop %v335
    %v337 = vmul.f32 %v215, 1.442695
    %v338 = vpow.pop %v337
    %v339 = vmul.f32 %v216, 1.442695
    %v340 = vpow.pop %v339
    %v341 = vmul.f32 %v217, 1.442695
    %v342 = vpow.pop %v341
    %v343 = vmul.f32 %v218, 1.442695
    %v344 = vpow.pop %v343
    %v345 = vmul.f32 %v219, 1.442695
    %v346 = vpow.pop %v345
    %v347 = vmul.f32 %v220, 1.442695
    %v348 = vpow.pop %v347
    %v349 = vadd.f32 %v222, 1.0
    %v350 = vadd.f32 %v224, 1.0
    %v351 = vadd.f32 %v226, 1.0
    %v352 = vadd.f32 %v228, 1.0
    %v353 = vadd.f32 %v230, 1.0
    %v354 = vadd.f32 %v232, 1.0
    %v355 = vadd.f32 %v234, 1.0
    %v356 = vadd.f32 %v236, 1.0
    %v357 = vadd.f32 %v238, 1.0
    %v358 = vadd.f32 %v240, 1.0
    %v359 = vadd.f32 %v242, 1.0
    %v360 = vadd.f32 %v244, 1.0
    %v361 = vadd.f32 %v246, 1.0
    %v362 = vadd.f32 %v248, 1.0
    %v363 = vadd.f32 %v250, 1.0
    %v364 = vadd.f32 %v252, 1.0
    %v365 = vadd.f32 %v254, 1.0
    %v366 = vadd.f32 %v256, 1.0
    %v367 = vadd.f32 %v258, 1.0
    %v368 = vadd.f32 %v260, 1.0
    %v369 = vadd.f32 %v262, 1.0
    %v370 = vadd.f32 %v264, 1.0
    %v371 = vadd.f32 %v266, 1.0
    %v372 = vadd.f32 %v268, 1.0
    %v373 = vadd.f32 %v270, 1.0
    %v374 = vadd.f32 %v272, 1.0
    %v375 = vadd.f32 %v274, 1.0
    %v376 = vadd.f32 %v276, 1.0
    %v377 = vadd.f32 %v278, 1.0
    %v378 = vadd.f32 %v280, 1.0
    %v379 = vadd.f32 %v282, 1.0
    %v380 = vadd.f32 %v284, 1.0
    %v381 = vadd.f32 %v286, 1.0
    %v382 = vadd.f32 %v288, 1.0
    %v383 = vadd.f32 %v290, 1.0
    %v384 = vadd.f32 %v292, 1.0
    %v385 = vadd.f32 %v294, 1.0
    %v386 = vadd.f32 %v296, 1.0
    %v387 = vadd.f32 %v298, 1.0
    %v388 = vadd.f32 %v300, 1.0
    %v389 = vadd.f32 %v302, 1.0
    %v390 = vadd.f32 %v304, 1.0
    %v391 = vadd.f32 %v306, 1.0
    %v392 = vadd.f32 %v308, 1.0
    %v393 = vadd.f32 %v310, 1.0
    %v394 = vadd.f32 %v312, 1.0
    %v395 = vadd.f32 %v314, 1.0
    %v396 = vadd.f32 %v316, 1.0
    %v397 = vadd.f32 %v318, 1.0
    %v398 = vadd.f32 %v320, 1.0
    %v399 = vadd.f32 %v322, 1.0
    %v400 = vadd.f32 %v324, 1.0
    %v401 = vadd.f32 %v326, 1.0
    %v402 = vadd.f32 %v328, 1.0
    %v403 = vadd.f32 %v330, 1.0
    %v404 = vadd.f32 %v332, 1.0
    %v405 = vadd.f32 %v334, 1.0
    %v406 = vadd.f32 %v336, 1.0
    %v407 = vadd.f32 %v338, 1.0
    %v408 = vadd.f32 %v340, 1.0
    %v409 = vadd.f32 %v342, 1.0
    %v410 = vadd.f32 %v344, 1.0
    %v411 = vadd.f32 %v346, 1.0
    %v412 = vadd.f32 %v348, 1.0
    %v413 = vrcp.pop %v349
    %v414 = vmul.f32 1.0, %v413
    %v415 = vrcp.pop %v350
    %v416 = vmul.f32 1.0, %v415
    %v417 = vrcp.pop %v351
    %v418 = vmul.f32 1.0, %v417
    %v419 = vrcp.pop %v352
    %v420 = vmul.f32 1.0, %v419
    %v421 = vrcp.pop %v353
    %v422 = vmul.f32 1.0, %v421
    %v423 = vrcp.pop %v354
    %v424 = vmul.f32 1.0, %v423
    %v425 = vrcp.pop %v355
    %v426 = vmul.f32 1.0, %v425
    %v427 = vrcp.pop %v356
    %v428 = vmul.f32 1.0, %v427
    %v429 = vrcp.pop %v357
    %v430 = vmul.f32 1.0, %v429
    %v431 = vrcp.pop %v358
    %v432 = vmul.f32 1.0, %v431
    %v433 = vrcp.pop %v359
    %v434 = vmul.f32 1.0, %v433
    %v435 = vrcp.pop %v360
    %v436 = vmul.f32 1.0, %v435
    %v437 = vrcp.pop %v361
    %v438 = vmul.f32 1.0, %v437
    %v439 = vrcp.pop %v362
    %v440 = vmul.f32 1.0, %v439
    %v441 = vrcp.pop %v363
    %v442 = vmul.f32 1.0, %v441
    %v443 = vrcp.pop %v364
    %v444 = vmul.f32 1.0, %v443
    %v445 = vrcp.pop %v365
    %v446 = vmul.f32 1.0, %v445
    %v447 = vrcp.pop %v366
    %v448 = vmul.f32 1.0, %v447
    %v449 = vrcp.pop %v367
    %v450 = vmul.f32 1.0, %v449
    %v451 = vrcp.pop %v368
    %v452 = vmul.f32 1.0, %v451
    %v453 = vrcp.pop %v369
    %v454 = vmul.f32 1.0, %v453
    %v455 = vrcp.pop %v370
    %v456 = vmul.f32 1.0, %v455
    %v457 = vrcp.pop %v371
    %v458 = vmul.f32 1.0, %v457
    %v459 = vrcp.pop %v372
    %v460 = vmul.f32 1.0, %v459
    %v461 = vrcp.pop %v373
    %v462 = vmul.f32 1.0, %v461
    %v463 = vrcp.pop %v374
    %v464 = vmul.f32 1.0, %v463
    %v465 = vrcp.pop %v375
    %v466 = vmul.f32 1.0, %v465
    %v467 = vrcp.pop %v376
    %v468 = vmul.f32 1.0, %v467
    %v469 = vrcp.pop %v377
    %v470 = vmul.f32 1.0, %v469
    %v471 = vrcp.pop %v378
    %v472 = vmul.f32 1.0, %v471
    %v473 = vrcp.pop %v379
    %v474 = vmul.f32 1.0, %v473
    %v475 = vrcp.pop %v380
    %v476 = vmul.f32 1.0, %v475
    %v477 = vrcp.pop %v381
    %v478 = vmul.f32 1.0, %v477
    %v479 = vrcp.pop %v382
    %v480 = vmul.f32 1.0, %v479
    %v481 = vrcp.pop %v383
    %v482 = vmul.f32 1.0, %v481
    %v483 = vrcp.pop %v384
    %v484 = vmul.f32 1.0, %v483
    %v485 = vrcp.pop %v385
    %v486 = vmul.f32 1.0, %v485
    %v487 = vrcp.pop %v386
    %v488 = vmul.f32 1.0, %v487
    %v489 = vrcp.pop %v387
    %v490 = vmul.f32 1.0, %v489
    %v491 = vrcp.pop %v388
    %v492 = vmul.f32 1.0, %v491
    %v493 = vrcp.pop %v389
    %v494 = vmul.f32 1.0, %v493
    %v495 = vrcp.pop %v390
    %v496 = vmul.f32 1.0, %v495
    %v497 = vrcp.pop %v391
    %v498 = vmul.f32 1.0, %v497
    %v499 = vrcp.pop %v392
    %v500 = vmul.f32 1.0, %v499
    %v501 = vrcp.pop %v393
    %v502 = vmul.f32 1.0, %v501
    %v503 = vrcp.pop %v394
    %v504 = vmul.f32 1.0, %v503
    %v505 = vrcp.pop %v395
    %v506 = vmul.f32 1.0, %v505
    %v507 = vrcp.pop %v396
    %v508 = vmul.f32 1.0, %v507
    %v509 = vrcp.pop %v397
    %v510 = vmul.f32 1.0, %v509
    %v511 = vrcp.pop %v398
    %v512 = vmul.f32 1.0, %v511
    %v513 = vrcp.pop %v399
    %v514 = vmul.f32 1.0, %v513
    %v515 = vrcp.pop %v400
    %v516 = vmul.f32 1.0, %v515
    %v517 = vrcp.pop %v401
    %v518 = vmul.f32 1.0, %v517
    %v519 = vrcp.pop %v402
    %v520 = vmul.f32 1.0, %v519
    %v521 = vrcp.pop %v403
    %v522 = vmul.f32 1.0, %v521
    %v523 = vrcp.pop %v404
    %v524 = vmul.f32 1.0, %v523
    %v525 = vrcp.pop %v405
    %v526 = vmul.f32 1.0, %v525
    %v527 = vrcp.pop %v406
    %v528 = vmul.f32 1.0, %v527
    %v529 = vrcp.pop %v407
    %v530 = vmul.f32 1.0, %v529
    %v531 = vrcp.pop %v408
    %v532 = vmul.f32 1.0, %v531
    %v533 = vrcp.pop %v409
    %v534 = vmul.f32 1.0, %v533
    %v535 = vrcp.pop %v410
    %v536 = vmul.f32 1.0, %v535
    %v537 = vrcp.pop %v411
    %v538 = vmul.f32 1.0, %v537
    %v539 = vrcp.pop %v412
    %v540 = vmul.f32 1.0, %v539
    %v541 = vmul.f32 %v28, %v414
    %v542 = vmul.f32 %v29, %v416
    %v543 = vmul.f32 %v30, %v418
    %v544 = vmul.f32 %v31, %v420
    %v545 = vmul.f32 %v32, %v422
    %v546 = vmul.f32 %v33, %v424
    %v547 = vmul.f32 %v34, %v426
    %v548 = vmul.f32 %v35, %v428
    %v549 = vmul.f32 %v36, %v430
    %v550 = vmul.f32 %v37, %v432
    %v551 = vmul.f32 %v38, %v434
    %v552 = vmul.f32 %v39, %v436
    %v553 = vmul.f32 %v40, %v438
    %v554 = vmul.f32 %v41, %v440
    %v555 = vmul.f32 %v42, %v442
    %v556 = vmul.f32 %v43, %v444
    %v557 = vmul.f32 %v44, %v446
    %v558 = vmul.f32 %v45, %v448
    %v559 = vmul.f32 %v46, %v450
    %v560 = vmul.f32 %v47, %v452
    %v561 = vmul.f32 %v48, %v454
    %v562 = vmul.f32 %v49, %v456
    %v563 = vmul.f32 %v50, %v458
    %v564 = vmul.f32 %v51, %v460
    %v565 = vmul.f32 %v52, %v462
    %v566 = vmul.f32 %v53, %v464
    %v567 = vmul.f32 %v54, %v466
    %v568 = vmul.f32 %v55, %v468
    %v569 = vmul.f32 %v56, %v470
    %v570 = vmul.f32 %v57, %v472
    %v571 = vmul.f32 %v58, %v474
    %v572 = vmul.f32 %v59, %v476
    %v573 = vmul.f32 %v60, %v478
    %v574 = vmul.f32 %v61, %v480
    %v575 = vmul.f32 %v62, %v482
    %v576 = vmul.f32 %v63, %v484
    %v577 = vmul.f32 %v64, %v486
    %v578 = vmul.f32 %v65, %v488
    %v579 = vmul.f32 %v66, %v490
    %v580 = vmul.f32 %v67, %v492
    %v581 = vmul.f32 %v68, %v494
    %v582 = vmul.f32 %v69, %v496
    %v583 = vmul.f32 %v70, %v498
    %v584 = vmul.f32 %v71, %v500
    %v585 = vmul.f32 %v72, %v502
    %v586 = vmul.f32 %v73, %v504
    %v587 = vmul.f32 %v74, %v506
    %v588 = vmul.f32 %v75, %v508
    %v589 = vmul.f32 %v76, %v510
    %v590 = vmul.f32 %v77, %v512
    %v591 = vmul.f32 %v78, %v514
    %v592 = vmul.f32 %v79, %v516
    %v593 = vmul.f32 %v80, %v518
    %v594 = vmul.f32 %v81, %v520
    %v595 = vmul.f32 %v82, %v522
    %v596 = vmul.f32 %v83, %v524
    %v597 = vmul.f32 %v84, %v526
    %v598 = vmul.f32 %v85, %v528
    %v599 = vmul.f32 %v86, %v530
    %v600 = vmul.f32 %v87, %v532
    %v601 = vmul.f32 %v88, %v534
    %v602 = vmul.f32 %v89, %v536
    %v603 = vmul.f32 %v90, %v538
    %v604 = vmul.f32 %v91, %v540
    %v605 = vmul.f32 %v541, 0.90909094
    %v606 = vmul.f32 %v542, 0.90909094
    %v607 = vmul.f32 %v543, 0.90909094
    %v608 = vmul.f32 %v544, 0.90909094
    %v609 = vmul.f32 %v545, 0.90909094
    %v610 = vmul.f32 %v546, 0.90909094
    %v611 = vmul.f32 %v547, 0.90909094
    %v612 = vmul.f32 %v548, 0.90909094
    %v613 = vmul.f32 %v549, 0.90909094
    %v614 = vmul.f32 %v550, 0.90909094
    %v615 = vmul.f32 %v551, 0.90909094
    %v616 = vmul.f32 %v552, 0.90909094
    %v617 = vmul.f32 %v553, 0.90909094
    %v618 = vmul.f32 %v554, 0.90909094
    %v619 = vmul.f32 %v555, 0.90909094
    %v620 = vmul.f32 %v556, 0.90909094
    %v621 = vmul.f32 %v557, 0.90909094
    %v622 = vmul.f32 %v558, 0.90909094
    %v623 = vmul.f32 %v559, 0.90909094
    %v624 = vmul.f32 %v560, 0.90909094
    %v625 = vmul.f32 %v561, 0.90909094
    %v626 = vmul.f32 %v562, 0.90909094
    %v627 = vmul.f32 %v563, 0.90909094
    %v628 = vmul.f32 %v564, 0.90909094
    %v629 = vmul.f32 %v565, 0.90909094
    %v630 = vmul.f32 %v566, 0.90909094
    %v631 = vmul.f32 %v567, 0.90909094
    %v632 = vmul.f32 %v568, 0.90909094
    %v633 = vmul.f32 %v569, 0.90909094
    %v634 = vmul.f32 %v570, 0.90909094
    %v635 = vmul.f32 %v571, 0.90909094
    %v636 = vmul.f32 %v572, 0.90909094
    %v637 = vmul.f32 %v573, 0.90909094
    %v638 = vmul.f32 %v574, 0.90909094
    %v639 = vmul.f32 %v575, 0.90909094
    %v640 = vmul.f32 %v576, 0.90909094
    %v641 = vmul.f32 %v577, 0.90909094
    %v642 = vmul.f32 %v578, 0.90909094
    %v643 = vmul.f32 %v579, 0.90909094
    %v644 = vmul.f32 %v580, 0.90909094
    %v645 = vmul.f32 %v581, 0.90909094
    %v646 = vmul.f32 %v582, 0.90909094
    %v647 = vmul.f32 %v583, 0.90909094
    %v648 = vmul.f32 %v584, 0.90909094
    %v649 = vmul.f32 %v585, 0.90909094
    %v650 = vmul.f32 %v586, 0.90909094
    %v651 = vmul.f32 %v587, 0.90909094
    %v652 = vmul.f32 %v588, 0.90909094
    %v653 = vmul.f32 %v589, 0.90909094
    %v654 = vmul.f32 %v590, 0.90909094
    %v655 = vmul.f32 %v591, 0.90909094
    %v656 = vmul.f32 %v592, 0.90909094
    %v657 = vmul.f32 %v593, 0.90909094
    %v658 = vmul.f32 %v594, 0.90909094
    %v659 = vmul.f32 %v595, 0.90909094
    %v660 = vmul.f32 %v596, 0.90909094
    %v661 = vmul.f32 %v597, 0.90909094
    %v662 = vmul.f32 %v598, 0.90909094
    %v663 = vmul.f32 %v599, 0.90909094
    %v664 = vmul.f32 %v600, 0.90909094
    %v665 = vmul.f32 %v601, 0.90909094
    %v666 = vmul.f32 %v602, 0.90909094
    %v667 = vmul.f32 %v603, 0.90909094
    %v668 = vmul.f32 %v604, 0.90909094
    %669 = vst [vmem:[#allocation6] sm:$0xff] %v605
    %670 = vst [vmem:[#allocation6 + $0x8] sm:$0xff] %v606
    %671 = vst [vmem:[#allocation6 + $0x10] sm:$0xff] %v607
    %672 = vst [vmem:[#allocation6 + $0x18] sm:$0xff] %v608
    %673 = vst [vmem:[#allocation6 + $0x20] sm:$0xff] %v609
    %674 = vst [vmem:[#allocation6 + $0x28] sm:$0xff] %v610
    %675 = vst [vmem:[#allocation6 + $0x30] sm:$0xff] %v611
    %676 = vst [vmem:[#allocation6 + $0x38] sm:$0xff] %v612
    %677 = vst [vmem:[#allocation6 + $0x40] sm:$0xff] %v613
    %678 = vst [vmem:[#allocation6 + $0x48] sm:$0xff] %v614
    %679 = vst [vmem:[#allocation6 + $0x50] sm:$0xff] %v615
    %680 = vst [vmem:[#allocation6 + $0x58] sm:$0xff] %v616
    %681 = vst [vmem:[#allocation6 + $0x60] sm:$0xff] %v617
    %682 = vst [vmem:[#allocation6 + $0x68] sm:$0xff] %v618
    %683 = vst [vmem:[#allocation6 + $0x70] sm:$0xff] %v619
    %684 = vst [vmem:[#allocation6 + $0x78] sm:$0xff] %v620
    %685 = vst [vmem:[#allocation6 + $0x80] sm:$0xff] %v621
    %686 = vst [vmem:[#allocation6 + $0x88] sm:$0xff] %v622
    %687 = vst [vmem:[#allocation6 + $0x90] sm:$0xff] %v623
    %688 = vst [vmem:[#allocation6 + $0x98] sm:$0xff] %v624
    %689 = vst [vmem:[#allocation6 + $0xa0] sm:$0xff] %v625
    %690 = vst [vmem:[#allocation6 + $0xa8] sm:$0xff] %v626
    %691 = vst [vmem:[#allocation6 + $0xb0] sm:$0xff] %v627
    %692 = vst [vmem:[#allocation6 + $0xb8] sm:$0xff] %v628
    %693 = vst [vmem:[#allocation6 + $0xc0] sm:$0xff] %v629
    %694 = vst [vmem:[#allocation6 + $0xc8] sm:$0xff] %v630
    %695 = vst [vmem:[#allocation6 + $0xd0] sm:$0xff] %v631
    %696 = vst [vmem:[#allocation6 + $0xd8] sm:$0xff] %v632
    %697 = vst [vmem:[#allocation6 + $0xe0] sm:$0xff] %v633
    %698 = vst [vmem:[#allocation6 + $0xe8] sm:$0xff] %v634
    %699 = vst [vmem:[#allocation6 + $0xf0] sm:$0xff] %v635
    %700 = vst [vmem:[#allocation6 + $0xf8] sm:$0xff] %v636
    %701 = vst [vmem:[#allocation6 + $0x100] sm:$0xff] %v637
    %702 = vst [vmem:[#allocation6 + $0x108] sm:$0xff] %v638
    %703 = vst [vmem:[#allocation6 + $0x110] sm:$0xff] %v639
    %704 = vst [vmem:[#allocation6 + $0x118] sm:$0xff] %v640
    %705 = vst [vmem:[#allocation6 + $0x120] sm:$0xff] %v641
    %706 = vst [vmem:[#allocation6 + $0x128] sm:$0xff] %v642
    %707 = vst [vmem:[#allocation6 + $0x130] sm:$0xff] %v643
    %708 = vst [vmem:[#allocation6 + $0x138] sm:$0xff] %v644
    %709 = vst [vmem:[#allocation6 + $0x140] sm:$0xff] %v645
    %710 = vst [vmem:[#allocation6 + $0x148] sm:$0xff] %v646
    %711 = vst [vmem:[#allocation6 + $0x150] sm:$0xff] %v647
    %712 = vst [vmem:[#allocation6 + $0x158] sm:$0xff] %v648
    %713 = vst [vmem:[#allocation6 + $0x160] sm:$0xff] %v649
    %714 = vst [vmem:[#allocation6 + $0x168] sm:$0xff] %v650
    %715 = vst [vmem:[#allocation6 + $0x170] sm:$0xff] %v651
    %716 = vst [vmem:[#allocation6 + $0x178] sm:$0xff] %v652
    %717 = vst [vmem:[#allocation6 + $0x180] sm:$0xff] %v653
    %718 = vst [vmem:[#allocation6 + $0x188] sm:$0xff] %v654
    %719 = vst [vmem:[#allocation6 + $0x190] sm:$0xff] %v655
    %720 = vst [vmem:[#allocation6 + $0x198] sm:$0xff] %v656
    %721 = vst [vmem:[#allocation6 + $0x1a0] sm:$0xff] %v657
    %722 = vst [vmem:[#allocation6 + $0x1a8] sm:$0xff] %v658
    %723 = vst [vmem:[#allocation6 + $0x1b0] sm:$0xff] %v659
    %724 = vst [vmem:[#allocation6 + $0x1b8] sm:$0xff] %v660
    %725 = vst [vmem:[#allocation6 + $0x1c0] sm:$0xff] %v661
    %726 = vst [vmem:[#allocation6 + $0x1c8] sm:$0xff] %v662
    %727 = vst [vmem:[#allocation6 + $0x1d0] sm:$0xff] %v663
    %728 = vst [vmem:[#allocation6 + $0x1d8] sm:$0xff] %v664
    %729 = vst [vmem:[#allocation6 + $0x1e0] sm:$0xff] %v665
    %730 = vst [vmem:[#allocation6 + $0x1e8] sm:$0xff] %v666
    %731 = vst [vmem:[#allocation6 + $0x1f0] sm:$0xff] %v667
    %732 = vst [vmem:[#allocation6 + $0x1f8] sm:$0xff] %v668
    // Predicated region
    $region14: #{tpu_custom_call.1} parent=1 // pred_check
      _
    $region15: #{tpu_custom_call.1} parent=1 // pred_check_branch
      %734 = sbr.rel (0) target = $region17
    $region16: #{tpu_custom_call.1} parent=1 // pred_region
      %s736 = ssub.s32 8192, 8192
      %737 = vsyncadd [#allocation5], %s736
      %s738 = sshll.u32 [#allocation6], 4
      %s739 = int_to_ptr.vmem [resolvable:$true] %s738
      %744 = dma.vmem_to_hbm [thread:$0]  %s739, 8192, %s2, [#allocation5], 1024, 1024, 64
    $region17: #{tpu_custom_call.1} parent=1 // pred_fallthru
      _
    // Predicated region
    $region18: #{tpu_custom_call.1} parent=1 // pred_check
      _
    $region19: #{tpu_custom_call.1} parent=1 // pred_check_branch
      %746 = sbr.rel (0) target = $region21
    $region20: #{tpu_custom_call.1} parent=1 // pred_region
      %747 = dma.done [#allocation5], 8192
    $region21: #{tpu_custom_call.1} parent=1 // pred_fallthru
      _
    %748 = vsyncpa [#allocation4], 1
    %749 = vsyncpa [#allocation5], 1

</llo_original>
